<compile_context>
chip_gen: v6e
topology: v6e:2x2x1
jax: 0.10.0
libtpu: 0.0.40
codegen_flags: <defaults>
</compile_context>

<pallas_src>
import jax
import jax.numpy as jnp
from jax.experimental import pallas as pl
from jax.experimental.pallas import tpu as pltpu


def _masked_add_kernel(blk_b_ref, blk_s_ref, x_ref, a_ref, m_ref, o_ref):
    """One (1, tile_s, tile_cols) block: out = where(mask, f32(x)+f32(a) -> dtype, x)."""
    del blk_b_ref, blk_s_ref  # scalar-prefetch tile ids; consumed by the index_maps
    x = x_ref[...]                                     # (1, tile_s, tile_cols)
    keep = m_ref[...] != 0                             # (1, tile_s, 1), lane-broadcast
    # Promote -> add -> cast, matching torch's (x[mask] + attack[mask]).to(x.dtype).
    y = (x.astype(jnp.float32) + a_ref[...].astype(jnp.float32)).astype(o_ref.dtype)
    o_ref[...] = jnp.where(keep, y, x)


def _round_down(v, m):
    return (v // m) * m


def _pick_tiles(S, D, itemsize):
    """Pick (tile_s, tile_cols, vmem_limit_bytes)."""
    # Column tiling: prefer full-D blocks (contiguous per-row DMA).  Only split
    # in two when D is large and both halves stay lane-dense (multiple of 128),
    # so the column grid axis can be shared across v7x's two TensorCores.
    if D >= 1024 and D % 256 == 0:
        tile_cols = D // 2
    else:
        tile_cols = D

    # Per-generation VMEM capacity (v5e/v6e: 128 MiB, v7x: 64 MiB per TC).
    try:
        vmem_cap = int(pltpu.get_tpu_info().vmem_capacity_bytes)
    except Exception:  # most conservative generation (v7x per-TC)
        vmem_cap = 64 * 1024 * 1024
    vmem_limit = min((vmem_cap * 3) // 4, 100 * 1024 * 1024)

    # 3 data streams (x, attack, out) x 2 pipeline buffers + padded mask block
    # + headroom -> budget each data block at ~1/7 of the scoped limit.
    per_block_budget = vmem_limit // 7
    bytes_per_row = max(tile_cols * itemsize, 1)
    tile_s = per_block_budget // bytes_per_row
    tile_s = min(int(tile_s), 1024, _round_down(S, 8))
    tile_s = max(8, _round_down(tile_s, 8))
    return tile_s, tile_cols, vmem_limit


def gd_adversary_forward(x, attack, attack_mask, *, min_pallas_bytes=1 << 20):
    """out = x, with (x + attack) written (in x.dtype) where attack_mask is True.

    x:           (B, S, D)
    attack:      (B, S_max, D) with S_max >= S   (fed to the kernel unsliced)
    attack_mask: (B, S_max) bool
    """
    B, S, D = x.shape
    S_max = attack.shape[1]
    assert attack.shape == (B, S_max, D)
    assert attack_mask.shape == (B, S_max)
    assert S_max >= S

    mask_s = attack_mask[:, :S]                 # (B, S) — tiny, no D factor

    def _fallback():
        y = (x.astype(jnp.float32) + attack[:, :S, :].astype(jnp.float32)).astype(x.dtype)
        return jnp.where(mask_s[..., None], y, x)

    # Small-input / awkward-shape fast path: pallas_call setup would dominate.
    if S < 8 or x.size * x.dtype.itemsize < min_pallas_bytes:
        return _fallback()

    itemsize = x.dtype.itemsize
    tile_s, tile_cols, vmem_limit = _pick_tiles(S, D, itemsize)
    # Rough live-VMEM check (3 streams x 2 buffers + padded mask blocks).
    if 6 * tile_s * tile_cols * itemsize + 2 * tile_s * 128 * 4 > vmem_limit:
        return _fallback()

    num_s = pl.cdiv(S, tile_s)
    num_d = pl.cdiv(D, tile_cols)
    T = B * num_s                                # total row tiles (static)

    # --- Block-level sparsity: compact active (batch, seq-tile) ids. ---------
    pad = num_s * tile_s - S
    mpad = jnp.pad(mask_s, ((0, 0), (0, pad)))                      # (B, num_s*tile_s)
    flags = mpad.reshape(B, num_s, tile_s).any(axis=-1).reshape(T)  # (T,) bool
    num_active = jnp.sum(flags.astype(jnp.int32))
    active_ids = jnp.nonzero(flags, size=T, fill_value=0)[0].astype(jnp.int32)
    # Pad the tail with one *inactive* tile id: visiting it is a pure copy
    # (idempotent even through the alias) and, since the id never changes at
    # the tail, the pipeline elides all further DMA for those iterations.
    inactive_id = jnp.nonzero(~flags, size=1, fill_value=0)[0][0].astype(jnp.int32)
    blk = jnp.where(jnp.arange(T, dtype=jnp.int32) < num_active, active_ids, inactive_id)
    blk_b = blk // num_s
    blk_s = blk % num_s

    # Mask as an int32 (B, S_max, 1) column; negligible bytes vs. x/attack.
    mask3d = attack_mask.astype(jnp.int32)[..., None]

    data_spec = pl.BlockSpec((1, tile_s, tile_cols),
                             lambda j, i, bb, bs: (bb[i], bs[i], j))
    mask_spec = pl.BlockSpec((1, tile_s, 1),
                             lambda j, i, bb, bs: (bb[i], bs[i], 0))

    out = pl.pallas_call(
        _masked_add_kernel,
        out_shape=jax.ShapeDtypeStruct((B, S, D), x.dtype),
        grid_spec=pltpu.PrefetchScalarGridSpec(
            num_scalar_prefetch=2,
            grid=(num_d, T),                     # parallel col-tiles, arbitrary row-tiles
            in_specs=[data_spec,                 # x
                      data_spec,                 # attack (unsliced, S_max >= S)
                      mask_spec],                # mask
            out_specs=data_spec,
        ),
        # Alias x -> out: row tiles whose mask is all-False are never visited
        # and keep their original contents.  (Index 2 = x, after the two
        # scalar-prefetch operands.)  Donate x under jit to avoid the copy.
        input_output_aliases={2: 0},
        compiler_params=pltpu.CompilerParams(
            dimension_semantics=("parallel", "arbitrary"),
            vmem_limit_bytes=int(vmem_limit),
        ),
    )(blk_b, blk_s, x, attack, mask3d)
    return out


def clip_attack(attack, epsilon):
    """GDAdversary.clip_attack: project each row of the attack onto the eps-ball."""
    norms = jnp.linalg.norm(attack, axis=-1, keepdims=True)
    scale = jnp.maximum(norms / epsilon, 1.0)
    return attack / scale


if __name__ == "__main__":
    key = jax.random.PRNGKey(0)
    kx, ka = jax.random.split(key, 2)

    batch, seq, seq_max, dim = 2, 20, 24, 128
    epsilon = 1.0

    x = jax.random.normal(kx, (batch, seq, dim), dtype=jnp.float32)
    attack = clip_attack(jax.random.normal(ka, (batch, seq_max, dim), dtype=jnp.float32),
                         epsilon)

    # Adversarial-span mask (B, S_max): batch 0 masks tokens 3..8 (first row
    # tile), batch 1 masks tokens 17..19 (ragged last row tile); the remaining
    # row tiles are all-False and exercise the block-skip + alias passthrough.
    # Positions >= seq are set True but must be ignored (PyTorch slices [:, :S]).
    attack_mask = jnp.zeros((batch, seq_max), dtype=bool)
    attack_mask = attack_mask.at[0, 3:9].set(True)
    attack_mask = attack_mask.at[1, 17:20].set(True)
    attack_mask = attack_mask.at[:, seq:].set(True)

    def reference(xv):
        y = (xv.astype(jnp.float32) + attack[:, :seq, :].astype(jnp.float32)).astype(xv.dtype)
        return jnp.where(attack_mask[:, :seq, None], y, xv)

    # Force the Pallas path even at this tiny demo size.
    y = gd_adversary_forward(x, attack, attack_mask, min_pallas_bytes=0)
    y = jax.block_until_ready(y)
    assert y.shape == x.shape and y.dtype == x.dtype
    assert jnp.allclose(y, reference(x), atol=1e-6, rtol=1e-6)

    # Mixed precision: bf16 activations with an f32 attack (promote, add, cast).
    x_bf16 = x.astype(jnp.bfloat16)
    y_bf16 = gd_adversary_forward(x_bf16, attack, attack_mask, min_pallas_bytes=0)
    y_bf16 = jax.block_until_ready(y_bf16)
    assert y_bf16.dtype == jnp.bfloat16
    assert jnp.array_equal(y_bf16, reference(x_bf16))

    print("KERNEL_OK")
</pallas_src>

<mosaic_0001>
module attributes {stable_mosaic.version = 11 : i64} {
  func.func @_masked_add_kernel(%arg0: i32, %arg1: i32, %arg2: memref<4xi32, #tpu.memory_space<smem>>, %arg3: memref<4xi32, #tpu.memory_space<smem>>, %arg4: memref<1x16x128xf32, #tpu.memory_space<vmem>>, %arg5: memref<1x16x128xf32, #tpu.memory_space<vmem>>, %arg6: memref<1x16x1xi32, #tpu.memory_space<vmem>>, %arg7: memref<1x16x128xf32, #tpu.memory_space<vmem>>) attributes {dimension_semantics = [#tpu.dimension_semantics<parallel>, #tpu.dimension_semantics<arbitrary>], iteration_bounds = array<i64: 1, 4>, scalar_prefetch = 2 : i64, scratch_operands = 0 : i64, tpu.core_type = #tpu.core_type<tc>, window_params = [{transform_indices = @transform_0, window_bounds = array<i64: 1, 16, 128>}, {transform_indices = @transform_1, window_bounds = array<i64: 1, 16, 128>}, {transform_indices = @transform_2, window_bounds = array<i64: 1, 16, 1>}, {transform_indices = @transform_3, window_bounds = array<i64: 1, 16, 128>}]} {
    %c0 = arith.constant 0 : index
    %c0_0 = arith.constant 0 : index
    %c0_1 = arith.constant 0 : index
    %0 = vector.load %arg4[%c0, %c0_0, %c0_1] : memref<1x16x128xf32, #tpu.memory_space<vmem>>, vector<1x16x128xf32>
    %c0_2 = arith.constant 0 : index
    %c0_3 = arith.constant 0 : index
    %c0_4 = arith.constant 0 : index
    %1 = vector.load %arg6[%c0_2, %c0_3, %c0_4] : memref<1x16x1xi32, #tpu.memory_space<vmem>>, vector<1x16x1xi32>
    %c0_i32 = arith.constant 0 : i32
    %2 = vector.broadcast %c0_i32 : i32 to vector<1x16x1xi32>
    %3 = arith.cmpi ne, %1, %2 : vector<1x16x1xi32>
    %c0_5 = arith.constant 0 : index
    %c0_6 = arith.constant 0 : index
    %c0_7 = arith.constant 0 : index
    %4 = vector.load %arg5[%c0_5, %c0_6, %c0_7] : memref<1x16x128xf32, #tpu.memory_space<vmem>>, vector<1x16x128xf32>
    %5 = arith.addf %0, %4 : vector<1x16x128xf32>
    %6 = vector.shape_cast %3 : vector<1x16x1xi1> to vector<1x16x1xi1>
    %7 = vector.broadcast %6 : vector<1x16x1xi1> to vector<1x16x128xi1>
    %8 = arith.select %7, %5, %0 : vector<1x16x128xi1>, vector<1x16x128xf32>
    %c0_8 = arith.constant 0 : index
    %c0_9 = arith.constant 0 : index
    %c0_10 = arith.constant 0 : index
    %9 = vector.load %arg7[%c0_8, %c0_9, %c0_10] : memref<1x16x128xf32, #tpu.memory_space<vmem>>, vector<1x16x128xf32>
    tpu.vector_store %arg7[%c0_8, %c0_9, %c0_10], %8 {strides = array<i32>} : memref<1x16x128xf32, #tpu.memory_space<vmem>>, vector<1x16x128xf32>,
    return
  }
  func.func @transform_0(%arg0: i32, %arg1: i32, %arg2: memref<4xi32, #tpu.memory_space<smem>>, %arg3: memref<4xi32, #tpu.memory_space<smem>>) -> (i32, i32, i32) {
    %0 = arith.index_cast %arg1 : i32 to index
    %1 = memref.load %arg2[%0] : memref<4xi32, #tpu.memory_space<smem>>
    %2 = arith.index_cast %arg1 : i32 to index
    %3 = memref.load %arg3[%2] : memref<4xi32, #tpu.memory_space<smem>>
    %c0_i32 = arith.constant 0 : i32
    return %1, %3, %arg0 : i32, i32, i32
  }
  func.func @transform_1(%arg0: i32, %arg1: i32, %arg2: memref<4xi32, #tpu.memory_space<smem>>, %arg3: memref<4xi32, #tpu.memory_space<smem>>) -> (i32, i32, i32) {
    %0 = arith.index_cast %arg1 : i32 to index
    %1 = memref.load %arg2[%0] : memref<4xi32, #tpu.memory_space<smem>>
    %2 = arith.index_cast %arg1 : i32 to index
    %3 = memref.load %arg3[%2] : memref<4xi32, #tpu.memory_space<smem>>
    %c0_i32 = arith.constant 0 : i32
    return %1, %3, %arg0 : i32, i32, i32
  }
  func.func @transform_2(%arg0: i32, %arg1: i32, %arg2: memref<4xi32, #tpu.memory_space<smem>>, %arg3: memref<4xi32, #tpu.memory_space<smem>>) -> (i32, i32, i32) {
    %0 = arith.index_cast %arg1 : i32 to index
    %1 = memref.load %arg2[%0] : memref<4xi32, #tpu.memory_space<smem>>
    %2 = arith.index_cast %arg1 : i32 to index
    %3 = memref.load %arg3[%2] : memref<4xi32, #tpu.memory_space<smem>>
    %c0_i32 = arith.constant 0 : i32
    %c0_i32_0 = arith.constant 0 : i32
    return %1, %3, %c0_i32 : i32, i32, i32
  }
  func.func @transform_3(%arg0: i32, %arg1: i32, %arg2: memref<4xi32, #tpu.memory_space<smem>>, %arg3: memref<4xi32, #tpu.memory_space<smem>>) -> (i32, i32, i32) {
    %0 = arith.index_cast %arg1 : i32 to index
    %1 = memref.load %arg2[%0] : memref<4xi32, #tpu.memory_space<smem>>
    %2 = arith.index_cast %arg1 : i32 to index
    %3 = memref.load %arg3[%2] : memref<4xi32, #tpu.memory_space<smem>>
    %c0_i32 = arith.constant 0 : i32
    return %1, %3, %arg0 : i32, i32, i32
  }
}

</mosaic_0001>

<llo_original>
// kernel: tpu_custom_call.1
$region0: #{tpu_custom_call.1}
  #allocation0 [shape = 'u32[]', space=smem, size = 0x4, offset = 0x4, fixed_abs, tag = 'smem constant byte address 0x4 - core index']
  #allocation1 [shape = 'u32[144,128]{1,0:T(1,128)}', space=vmem, size = 0x12000, scoped, tag = 'internal scratch']
  #allocation2 [shape = 's32[1]{0}', space=sflag, size = 0x4, scoped, tag = 'scoped memory for tpu_custom_call.1']
  #allocation3 [shape = 'u8[512]{0}', space=smem, size = 0x200, scoped, tag = 'prefetched SMEM operand 0']
  #allocation4 [shape = 'u8[512]{0}', space=smem, size = 0x200, scoped, tag = 'prefetched SMEM operand 1']
  %s0 = inlined_call_operand.vmem [shape: s32[4], index: 0, kind: input, shape index: {}]
  %s1 = inlined_call_operand.vmem [shape: s32[4], index: 1, kind: input, shape index: {}]
  %s2 = inlined_call_operand.vmem [shape: f32[2,20,128], index: 2, kind: input, shape index: {}, may-alias: {2,5}]
  %s3 = inlined_call_operand.vmem [shape: f32[2,24,128], index: 3, kind: input, shape index: {}]
  %s4 = inlined_call_operand.vmem [shape: s32[2,24,1], index: 4, kind: input, shape index: {}]
  %s5 = inlined_call_operand.vmem [shape: f32[2,20,128], index: 5, kind: output, shape index: {}, may-alias: {2,5}]
  %s6 = sld [smem:[#allocation0]]
  $region93: #{tpu_custom_call.1} parent=0
    _
  %s8 = ssub.s32 1, %s6
  %s9 = scalar_select 0, %s8, %s6
  %s10 = sshll.u32 %s0, 4
  %s11 = int_to_ptr.vmem [resolvable:$true] %s10
  %13 = dma.vmem_to_smem %s11, 16, [#allocation3], [#allocation2]
  %s14 = sshll.u32 %s1, 4
  %s15 = int_to_ptr.vmem [resolvable:$true] %s14
  %17 = dma.vmem_to_smem %s15, 16, [#allocation4], [#allocation2]
  %18 = dma.done [#allocation2], 32
  %19 = sfence
  $region1: #{tpu_custom_call.1} parent=0
    #allocation5 [shape = 'u8[16384]{0}', space=vmem, size = 0x4000, scoped, tag = 'output window, operand 0']
    loop: start=0, step=1, limit=6
    $region2: #{tpu_custom_call.1} parent=1 // loop_pre_header
      _
    $region3: #{tpu_custom_call.1} parent=1 // loop_header
      %s21 = sphi 0, %s25
      %p22 = scmp.ge.s32.totalorder %s21, 6
      %s28 = sphi 0, %s40
      %s29 = sphi 0, %s36
      %s30 = sphi 0, %s28
      %s31 = sphi 0, %s29
      %s32 = sphi 0, %s30
      %s33 = sphi 0, %s31
      %s51 = sphi 0, %s53
      %s54 = sphi 0, %s51
      %s55 = sphi 0, %s54
      %s71 = sphi 0, %s55
      %s85 = sphi 0, %s87
      %s88 = sphi 0, %s85
      %s89 = sphi 0, %s88
      %s105 = sphi 0, %s89
      %s117 = sphi 0, %s119
      %s120 = sphi 0, %s117
      %s121 = sphi 0, %s120
      %s137 = sphi 0, %s121
      %s151 = sphi 0, %s153
      %s154 = sphi 0, %s151
      %s155 = sphi 0, %s154
      %s171 = sphi 0, %s155
    $region4: #{tpu_custom_call.1} parent=1 // loop_header_branch
      %24 = sbr.rel (%p22) target = $region8
    $region5: #{tpu_custom_call.1} parent=1 // loop_body
      %s26 = ssub.s32 %s21, 1
      %s27 = ssub.s32 %s21, 2
      %s34 = sadd.s32 1, %s29
      %p35 = scmp.ge.s32.totalorder %s34, 4
      %s36 = scalar_select %p35, 0, %s34
      %s37 = sadd.s32 1, %s28
      %s38 = scalar_select %p35, %s37, %s28
      %p39 = scmp.ge.s32.totalorder %s38, 1
      %s40 = scalar_select %p39, 0, %s38
      %s41 = sld [smem:[#allocation3 + %s29]]
      %s42 = sld [smem:[#allocation4 + %s29]]
      %s43 = sld [smem:[#allocation3 + %s36]]
      %s44 = sld [smem:[#allocation4 + %s36]]
      %s45 = ssub.s32 %s41, %s43
      %s46 = ssub.s32 %s42, %s44
      %s47 = sor.u32 %s45, %s46
      %s48 = ssub.s32 %s28, %s40
      %s49 = sor.u32 %s47, %s48
      %p50 = scmp.eq.s32.totalorder %s49, 0
      %s52 = sadd.s32 %s51, 1
      %s53 = scalar_select %p50, %s51, %s52
      %p56 = pneg %p50
      %p57 = scmp.eq.s32.totalorder %s21, 3
      %p58 = por %p56, %p57
      %p59 = scmp.ne.s32.totalorder %s51, %s54
      %p60 = scmp.eq.s32.totalorder %s21, 0
      %p61 = por %p59, %p60
      %p62 = scmp.ne.s32.totalorder %s51, %s54
      %p63 = scmp.eq.s32.totalorder %s26, 3
      %p64 = por %p62, %p63
      %p65 = scmp.ne.s32.totalorder %s54, %s55
      %p66 = scmp.eq.s32.totalorder %s26, 0
      %p67 = por %p65, %p66
      %p68 = scmp.ne.s32.totalorder %s54, %s55
      %p69 = scmp.eq.s32.totalorder %s27, 3
      %p70 = por %p68, %p69
      %p72 = scmp.ne.s32.totalorder %s55, %s71
      %p73 = scmp.eq.s32.totalorder %s27, 0
      %p74 = por %p72, %p73
      %s75 = sld [smem:[#allocation3 + %s29]]
      %s76 = sld [smem:[#allocation4 + %s29]]
      %s77 = sld [smem:[#allocation3 + %s36]]
      %s78 = sld [smem:[#allocation4 + %s36]]
      %s79 = ssub.s32 %s75, %s77
      %s80 = ssub.s32 %s76, %s78
      %s81 = sor.u32 %s79, %s80
      %s82 = ssub.s32 %s28, %s40
      %s83 = sor.u32 %s81, %s82
      %p84 = scmp.eq.s32.totalorder %s83, 0
      %s86 = sadd.s32 %s85, 1
      %s87 = scalar_select %p84, %s85, %s86
      %p90 = pneg %p84
      %p91 = scmp.eq.s32.totalorder %s21, 3
      %p92 = por %p90, %p91
      %p93 = scmp.ne.s32.totalorder %s85, %s88
      %p94 = scmp.eq.s32.totalorder %s21, 0
      %p95 = por %p93, %p94
      %p96 = scmp.ne.s32.totalorder %s85, %s88
      %p97 = scmp.eq.s32.totalorder %s26, 3
      %p98 = por %p96, %p97
      %p99 = scmp.ne.s32.totalorder %s88, %s89
      %p100 = scmp.eq.s32.totalorder %s26, 0
      %p101 = por %p99, %p100
      %p102 = scmp.ne.s32.totalorder %s88, %s89
      %p103 = scmp.eq.s32.totalorder %s27, 3
      %p104 = por %p102, %p103
      %p106 = scmp.ne.s32.totalorder %s89, %s105
      %p107 = scmp.eq.s32.totalorder %s27, 0
      %p108 = por %p106, %p107
      %s109 = sld [smem:[#allocation3 + %s29]]
      %s110 = sld [smem:[#allocation4 + %s29]]
      %s111 = sld [smem:[#allocation3 + %s36]]
      %s112 = sld [smem:[#allocation4 + %s36]]
      %s113 = ssub.s32 %s109, %s111
      %s114 = ssub.s32 %s110, %s112
      %s115 = sor.u32 %s113, %s114
      %p116 = scmp.eq.s32.totalorder %s115, 0
      %s118 = sadd.s32 %s117, 1
      %s119 = scalar_select %p116, %s117, %s118
      %p122 = pneg %p116
      %p123 = scmp.eq.s32.totalorder %s21, 3
      %p124 = por %p122, %p123
      %p125 = scmp.ne.s32.totalorder %s117, %s120
      %p126 = scmp.eq.s32.totalorder %s21, 0
      %p127 = por %p125, %p126
      %p128 = scmp.ne.s32.totalorder %s117, %s120
      %p129 = scmp.eq.s32.totalorder %s26, 3
      %p130 = por %p128, %p129
      %p131 = scmp.ne.s32.totalorder %s120, %s121
      %p132 = scmp.eq.s32.totalorder %s26, 0
      %p133 = por %p131, %p132
      %p134 = scmp.ne.s32.totalorder %s120, %s121
      %p135 = scmp.eq.s32.totalorder %s27, 3
      %p136 = por %p134, %p135
      %p138 = scmp.ne.s32.totalorder %s121, %s137
      %p139 = scmp.eq.s32.totalorder %s27, 0
      %p140 = por %p138, %p139
      %s141 = sld [smem:[#allocation3 + %s29]]
      %s142 = sld [smem:[#allocation4 + %s29]]
      %s143 = sld [smem:[#allocation3 + %s36]]
      %s144 = sld [smem:[#allocation4 + %s36]]
      %s145 = ssub.s32 %s141, %s143
      %s146 = ssub.s32 %s142, %s144
      %s147 = sor.u32 %s145, %s146
      %s148 = ssub.s32 %s28, %s40
      %s149 = sor.u32 %s147, %s148
      %p150 = scmp.eq.s32.totalorder %s149, 0
      %s152 = sadd.s32 %s151, 1
      %s153 = scalar_select %p150, %s151, %s152
      %p156 = pneg %p150
      %p157 = scmp.eq.s32.totalorder %s21, 3
      %p158 = por %p156, %p157
      %p159 = scmp.ne.s32.totalorder %s151, %s154
      %p160 = scmp.eq.s32.totalorder %s21, 0
      %p161 = por %p159, %p160
      %p162 = scmp.ne.s32.totalorder %s151, %s154
      %p163 = scmp.eq.s32.totalorder %s26, 3
      %p164 = por %p162, %p163
      %p165 = scmp.ne.s32.totalorder %s154, %s155
      %p166 = scmp.eq.s32.totalorder %s26, 0
      %p167 = por %p165, %p166
      %p168 = scmp.ne.s32.totalorder %s154, %s155
      %p169 = scmp.eq.s32.totalorder %s27, 3
      %p170 = por %p168, %p169
      %p172 = scmp.ne.s32.totalorder %s155, %s171
      %p173 = scmp.eq.s32.totalorder %s27, 0
      %p174 = por %p172, %p173
      %p175 = scmp.le.s32.totalorder 1, %s21
      %p176 = scmp.lt.s32.totalorder %s21, 5
      %p177 = pnand %p175, %p176
      %p178 = pneg %p177
      // Predicated region
      $region9: #{tpu_custom_call.1} parent=5 // pred_check
        _
      $region10: #{tpu_custom_call.1} parent=5 // pred_check_branch
        %180 = sbr.rel (%p177) target = $region12
      $region11: #{tpu_custom_call.1} parent=5 // pred_region
        %s181 = ssub.s32 %s21, 1
      $region12: #{tpu_custom_call.1} parent=5 // pred_fallthru
        _
      %p182 = scmp.lt.s32.totalorder %s21, 4
      // Predicated region
      $region13: #{tpu_custom_call.1} parent=5 // pred_check
        %p183 = pneg %p182
      $region14: #{tpu_custom_call.1} parent=5 // pred_check_branch
        %185 = sbr.rel (%p183) target = $region16
      $region15: #{tpu_custom_call.1} parent=5 // pred_region
        // Predicated region
        $region17: #{tpu_custom_call.1} parent=15 // pred_check
          %p186 = pneg %p61
        $region18: #{tpu_custom_call.1} parent=15 // pred_check_branch
          %188 = sbr.rel (%p186) target = $region20
        $region19: #{tpu_custom_call.1} parent=15 // pred_region
          %s189 = sld [smem:[#allocation3 + %s29]]
          %s190 = sld [smem:[#allocation4 + %s29]]
          %s191 = smul.u32 2, %s190
          %s192 = ssub.s32 3, %s191
          %p193 = scmp.lt.s32.totalorder %s192, 2
          %s194 = scalar_select %p193, %s192, 2
          %s195 = smul.u32 128, %s194
          %p196 = scmp.lt.s32.totalorder %s189, 1
          %s197 = scalar_select %p196, %s189, 1
          %p198 = scmp.lt.s32.totalorder %s191, 2
          %s199 = scalar_select %p198, %s191, 2
          %p200 = scmp.lt.s32.totalorder %s28, 0
          %s201 = scalar_select %p200, %s28, 0
          %s202 = sadd.s32 %s201, %s199
          %s203 = smul.addr %s197, 3
          %s204 = sadd.s32 %s202, %s203
          %s205 = smul.addr %s204, 8
          %s206 = scalar_lea.vmem %s2, %s205
          %s207 = sld [smem:[#allocation3 + %s29]]
          %s208 = sld [smem:[#allocation4 + %s29]]
          %s209 = smul.u32 2, %s208
          %s210 = ssub.s32 3, %s209
          %p211 = scmp.lt.s32.totalorder %s210, 2
          %s212 = scalar_select %p211, %s210, 2
          %s213 = smul.u32 128, %s212
        $region20: #{tpu_custom_call.1} parent=15 // pred_fallthru
          _
        // Predicated region
        $region21: #{tpu_custom_call.1} parent=15 // pred_check
          %p214 = pneg %p95
        $region22: #{tpu_custom_call.1} parent=15 // pred_check_branch
          %216 = sbr.rel (%p214) target = $region24
        $region23: #{tpu_custom_call.1} parent=15 // pred_region
          %s217 = sld [smem:[#allocation3 + %s29]]
          %s218 = sld [smem:[#allocation4 + %s29]]
          %s219 = smul.u32 2, %s218
          %s220 = ssub.s32 3, %s219
          %p221 = scmp.lt.s32.totalorder %s220, 2
          %s222 = scalar_select %p221, %s220, 2
          %s223 = smul.u32 128, %s222
          %p224 = scmp.lt.s32.totalorder %s217, 1
          %s225 = scalar_select %p224, %s217, 1
          %p226 = scmp.lt.s32.totalorder %s219, 2
          %s227 = scalar_select %p226, %s219, 2
          %p228 = scmp.lt.s32.totalorder %s28, 0
          %s229 = scalar_select %p228, %s28, 0
          %s230 = sadd.s32 %s229, %s227
          %s231 = smul.addr %s225, 3
          %s232 = sadd.s32 %s230, %s231
          %s233 = smul.addr %s232, 8
          %s234 = scalar_lea.vmem %s3, %s233
          %s235 = sld [smem:[#allocation3 + %s29]]
          %s236 = sld [smem:[#allocation4 + %s29]]
          %s237 = smul.u32 2, %s236
          %s238 = ssub.s32 3, %s237
          %p239 = scmp.lt.s32.totalorder %s238, 2
          %s240 = scalar_select %p239, %s238, 2
          %s241 = smul.u32 128, %s240
        $region24: #{tpu_custom_call.1} parent=15 // pred_fallthru
          _
        // Predicated region
        $region25: #{tpu_custom_call.1} parent=15 // pred_check
          %p242 = pneg %p127
        $region26: #{tpu_custom_call.1} parent=15 // pred_check_branch
          %244 = sbr.rel (%p242) target = $region28
        $region27: #{tpu_custom_call.1} parent=15 // pred_region
          %s245 = sld [smem:[#allocation3 + %s29]]
          %s246 = sld [smem:[#allocation4 + %s29]]
          %s247 = smul.u32 2, %s246
          %s248 = ssub.s32 3, %s247
          %p249 = scmp.lt.s32.totalorder %s248, 2
          %s250 = scalar_select %p249, %s248, 2
          %s251 = smul.u32 128, %s250
          %p252 = scmp.lt.s32.totalorder %s245, 1
          %s253 = scalar_select %p252, %s245, 1
          %p254 = scmp.lt.s32.totalorder %s247, 2
          %s255 = scalar_select %p254, %s247, 2
          %s256 = smul.addr %s253, 3
          %s257 = sadd.s32 %s255, %s256
          %s258 = smul.addr %s257, 8
          %s259 = scalar_lea.vmem %s4, %s258
          %s260 = sld [smem:[#allocation3 + %s29]]
          %s261 = sld [smem:[#allocation4 + %s29]]
          %s262 = smul.u32 2, %s261
          %s263 = ssub.s32 3, %s262
          %p264 = scmp.lt.s32.totalorder %s263, 2
          %s265 = scalar_select %p264, %s263, 2
          %s266 = smul.u32 128, %s265
        $region28: #{tpu_custom_call.1} parent=15 // pred_fallthru
          _
      $region16: #{tpu_custom_call.1} parent=5 // pred_fallthru
        _
      %p267 = scmp.le.s32.totalorder 1, %s21
      %p268 = scmp.lt.s32.totalorder %s21, 5
      %p269 = pnand %p267, %p268
      %p270 = pneg %p269
      // Predicated region
      $region29: #{tpu_custom_call.1} parent=5 // pred_check
        _
      $region30: #{tpu_custom_call.1} parent=5 // pred_check_branch
        %272 = sbr.rel (%p269) target = $region32
      $region31: #{tpu_custom_call.1} parent=5 // pred_region
        %s273 = ssub.s32 %s21, 1
        %s274 = sld [smem:[#allocation3 + %s31]]
        %s275 = sld [smem:[#allocation4 + %s31]]
        %s276 = smul.u32 2, %s275
        %s277 = ssub.s32 3, %s276
        %p278 = scmp.lt.s32.totalorder %s277, 2
        %s279 = scalar_select %p278, %s277, 2
        %s280 = smul.u32 128, %s279
        %p281 = scmp.lt.s32.totalorder %s274, 1
        %s282 = scalar_select %p281, %s274, 1
        %p283 = scmp.lt.s32.totalorder %s276, 2
        %s284 = scalar_select %p283, %s276, 2
        %p285 = scmp.lt.s32.totalorder %s30, 0
        %s286 = scalar_select %p285, %s30, 0
        %s287 = sadd.s32 %s286, %s284
        %s288 = smul.addr %s282, 3
        %s289 = sadd.s32 %s287, %s288
        %s290 = smul.addr %s289, 8
        %s291 = scalar_lea.vmem %s2, %s290
        %p292 = pneg %p67
        %p293 = pneg %p64
        %s294 = sld [smem:[#allocation3 + %s31]]
        %s295 = sld [smem:[#allocation4 + %s31]]
        %s296 = smul.u32 2, %s295
        %s297 = ssub.s32 3, %s296
        %p298 = scmp.lt.s32.totalorder %s297, 2
        %s299 = scalar_select %p298, %s297, 2
        %s300 = smul.u32 128, %s299
        %p301 = scmp.lt.s32.totalorder %s294, 1
        %s302 = scalar_select %p301, %s294, 1
        %p303 = scmp.lt.s32.totalorder %s296, 2
        %s304 = scalar_select %p303, %s296, 2
        %p305 = scmp.lt.s32.totalorder %s30, 0
        %s306 = scalar_select %p305, %s30, 0
        %s307 = sadd.s32 %s306, %s304
        %s308 = smul.addr %s302, 3
        %s309 = sadd.s32 %s307, %s308
        %s310 = smul.addr %s309, 8
        %s311 = scalar_lea.vmem %s3, %s310
        %p312 = pneg %p101
        %p313 = pneg %p98
        %s314 = sld [smem:[#allocation3 + %s31]]
        %s315 = sld [smem:[#allocation4 + %s31]]
        %s316 = smul.u32 2, %s315
        %s317 = ssub.s32 3, %s316
        %p318 = scmp.lt.s32.totalorder %s317, 2
        %s319 = scalar_select %p318, %s317, 2
        %s320 = smul.u32 128, %s319
        %p321 = scmp.lt.s32.totalorder %s314, 1
        %s322 = scalar_select %p321, %s314, 1
        %p323 = scmp.lt.s32.totalorder %s316, 2
        %s324 = scalar_select %p323, %s316, 2
        %s325 = smul.addr %s322, 3
        %s326 = sadd.s32 %s324, %s325
        %s327 = smul.addr %s326, 8
        %s328 = scalar_lea.vmem %s4, %s327
        %p329 = pneg %p133
        %p330 = pneg %p130
        %p331 = pneg %p167
        %p332 = pneg %p164
        %s333 = sand.u32 %s154, 1
        %s334 = sand.u32 %s154, 1
        %s335 = smul.addr %s334, 16
        %s336 = scalar_lea.vmem [#allocation5], %s335
        %s337 = sld [smem:[#allocation3 + %s31]]
        %s338 = sld [smem:[#allocation4 + %s31]]
        %s339 = smul.u32 2, %s338
        %s340 = ssub.s32 3, %s339
        %p341 = scmp.lt.s32.totalorder %s340, 2
        %s342 = scalar_select %p341, %s340, 2
        %s343 = smul.u32 128, %s342
        %p344 = scmp.lt.s32.totalorder %s337, 1
        %s345 = scalar_select %p344, %s337, 1
        %p346 = scmp.lt.s32.totalorder %s339, 2
        %s347 = scalar_select %p346, %s339, 2
        %p348 = scmp.lt.s32.totalorder %s30, 0
        %s349 = scalar_select %p348, %s30, 0
        %s350 = sadd.s32 %s349, %s347
        %s351 = smul.addr %s345, 3
        %s352 = sadd.s32 %s350, %s351
        %s353 = smul.addr %s352, 8
        %s354 = scalar_lea.vmem %s2, %s353
        %s355 = sld [smem:[#allocation3 + %s31]]
        %s356 = sld [smem:[#allocation4 + %s31]]
        %s357 = smul.u32 2, %s356
        %s358 = ssub.s32 3, %s357
        %p359 = scmp.lt.s32.totalorder %s358, 2
        %s360 = scalar_select %p359, %s358, 2
        %s361 = smul.u32 128, %s360
        %s362 = sld [smem:[#allocation3 + %s31]]
        %s363 = sld [smem:[#allocation4 + %s31]]
        %s364 = smul.u32 2, %s363
        %s365 = ssub.s32 3, %s364
        %p366 = scmp.lt.s32.totalorder %s365, 2
        %s367 = scalar_select %p366, %s365, 2
        %s368 = smul.u32 128, %s367
        %p369 = scmp.lt.s32.totalorder %s362, 1
        %s370 = scalar_select %p369, %s362, 1
        %p371 = scmp.lt.s32.totalorder %s364, 2
        %s372 = scalar_select %p371, %s364, 2
        %p373 = scmp.lt.s32.totalorder %s30, 0
        %s374 = scalar_select %p373, %s30, 0
        %s375 = sadd.s32 %s374, %s372
        %s376 = smul.addr %s370, 3
        %s377 = sadd.s32 %s375, %s376
        %s378 = smul.addr %s377, 8
        %s379 = scalar_lea.vmem %s3, %s378
        %s380 = sld [smem:[#allocation3 + %s31]]
        %s381 = sld [smem:[#allocation4 + %s31]]
        %s382 = smul.u32 2, %s381
        %s383 = ssub.s32 3, %s382
        %p384 = scmp.lt.s32.totalorder %s383, 2
        %s385 = scalar_select %p384, %s383, 2
        %s386 = smul.u32 128, %s385
        %s387 = sld [smem:[#allocation3 + %s31]]
        %s388 = sld [smem:[#allocation4 + %s31]]
        %s389 = smul.u32 2, %s388
        %s390 = ssub.s32 3, %s389
        %p391 = scmp.lt.s32.totalorder %s390, 2
        %s392 = scalar_select %p391, %s390, 2
        %s393 = smul.u32 128, %s392
        %p394 = scmp.lt.s32.totalorder %s387, 1
        %s395 = scalar_select %p394, %s387, 1
        %p396 = scmp.lt.s32.totalorder %s389, 2
        %s397 = scalar_select %p396, %s389, 2
        %s398 = smul.addr %s395, 3
        %s399 = sadd.s32 %s397, %s398
        %s400 = smul.addr %s399, 8
        %s401 = scalar_lea.vmem %s4, %s400
        %s402 = sld [smem:[#allocation3 + %s31]]
        %s403 = sld [smem:[#allocation4 + %s31]]
        %s404 = smul.u32 2, %s403
        %s405 = ssub.s32 3, %s404
        %p406 = scmp.lt.s32.totalorder %s405, 2
        %s407 = scalar_select %p406, %s405, 2
        %s408 = smul.u32 128, %s407
        %s409 = sld [smem:[#allocation3 + %s31]]
        %s410 = sld [smem:[#allocation4 + %s31]]
        %s411 = smul.u32 2, %s410
        %s412 = ssub.s32 3, %s411
        %p413 = scmp.lt.s32.totalorder %s412, 2
        %s414 = scalar_select %p413, %s412, 2
        %s415 = smul.u32 128, %s414
        %v416 = vld [vmem:[%s354] sm:$0xff]
        %v417 = vld [vmem:[%s354 + $0x8] sm:$0xff]
        %v418 = vld [vmem:[%s401] sm:$0xff]
        %v419 = vld [vmem:[%s401 + $0x8] sm:$0xff]
        %vm420 = vcmp.ne.s32.totalorder %v418, 0
        %vm421 = vcmp.ne.s32.totalorder %v419, 0
        %v422 = vld [vmem:[%s379] sm:$0xff]
        %v423 = vld [vmem:[%s379 + $0x8] sm:$0xff]
        %v424 = vadd.f32 %v416, %v422
        %v425 = vadd.f32 %v417, %v423
        %v426 = vsel %vm420, 1, 0
        %v427 = vsel %vm421, 1, 0
        %428 = vset.pattern.permute.xlu0 0
        %429 = vperm.xlu0 %428, %v426
        %v430 = vpop.permute.xlu0 %429
        %431 = vset.pattern.permute.xlu0 0
        %432 = vperm.xlu0 %431, %v427
        %v433 = vpop.permute.xlu0 %432
        %vm434 = vcmp.eq.s32.totalorder %v430, 1
        %vm435 = vcmp.eq.s32.totalorder %v433, 1
        %v436 = vsel %vm434, %v424, %v416
        %v437 = vsel %vm435, %v425, %v417
        %438 = vst [vmem:[%s336] sm:$0xff] %v436
        %439 = vst [vmem:[%s336 + $0x8] sm:$0xff] %v437
        %s440 = sand.u32 %s154, 1
        %s441 = sand.u32 %s154, 1
        %s442 = smul.addr %s441, 16
        %s443 = scalar_lea.vmem [#allocation5], %s442
        // Predicated region
        $region33: #{tpu_custom_call.1} parent=31 // pred_check
          %p444 = pneg %p164
        $region34: #{tpu_custom_call.1} parent=31 // pred_check_branch
          %446 = sbr.rel (%p444) target = $region36
        $region35: #{tpu_custom_call.1} parent=31 // pred_region
          %s447 = sld [smem:[#allocation3 + %s31]]
          %s448 = sld [smem:[#allocation4 + %s31]]
          %s449 = smul.u32 2, %s448
          %s450 = ssub.s32 3, %s449
          %p451 = scmp.lt.s32.totalorder %s450, 2
          %s452 = scalar_select %p451, %s450, 2
          %s453 = smul.u32 128, %s452
          %p454 = scmp.ne.s32.totalorder 0, %s453
          %s455 = sadd.s32 %s30, %s449
          %s456 = smul.addr %s447, 3
          %s457 = sadd.s32 %s455, %s456
          %s458 = smul.addr %s457, 8
          %s459 = scalar_lea.vmem %s5, %s458
          // Predicated region
          $region37: #{tpu_custom_call.1} parent=35 // pred_check
            %p460 = pneg %p454
          $region38: #{tpu_custom_call.1} parent=35 // pred_check_branch
            %462 = sbr.rel (%p460) target = $region40
          $region39: #{tpu_custom_call.1} parent=35 // pred_region
            // Predicated region
            $region41: #{tpu_custom_call.1} parent=39 // pred_check
              _
            $region42: #{tpu_custom_call.1} parent=39 // pred_check_branch
              %464 = sbr.rel (0) target = $region44
            $region43: #{tpu_custom_call.1} parent=39 // pred_region
              // Predicated region
              $region63: #{tpu_custom_call.1} parent=43 // pred_check
                _
              $region64: #{tpu_custom_call.1} parent=43 // pred_check_branch
                %516 = sbr.rel (0) target = $region66
              $region65: #{tpu_custom_call.1} parent=43 // pred_region
                %s517 = sshrl.u32 %s452, 1
                // While loop
                $region67: #{tpu_custom_call.1} parent=65 // loop_pre_header
                  _
                $region68: #{tpu_custom_call.1} parent=65 // loop_header
                  %s519 = sphi 0, %s521
                  %p520 = scmp.ge.s32.totalorder %s519, %s517
                  %s524 = sphi 0, %s533
                  %s525 = sphi %s443, %s536
                  %s526 = sphi %s459, %s537
                $region69: #{tpu_custom_call.1} parent=65 // loop_header_branch
                  %523 = sbr.rel (%p520) target = $region73
                $region70: #{tpu_custom_call.1} parent=65 // loop_body
                  %v527 = vld [vmem:[%s525] sm:$0xff]
                  %528 = vst [vmem:[%s526] sm:$0xff] %v527
                  %v529 = vld [vmem:[%s525 + $0x8] sm:$0xff]
                  %530 = vst [vmem:[%s526 + $0x8] sm:$0xff] %v529
                  %s531 = sadd.s32 1, %s524
                  %p532 = scmp.ge.s32.totalorder %s531, %s517
                  %s533 = scalar_select %p532, 0, %s531
                  %s534 = smul.u32 %s533, 16
                  %s535 = smul.u32 %s533, 16
                  %s536 = scalar_lea.vmem %s443, %s534 [#allocation5]
                  %s537 = scalar_lea.vmem %s459, %s535
                $region71: #{tpu_custom_call.1} parent=65 // loop_footer
                  %s521 = sadd.s32 %s519, 1
                $region72: #{tpu_custom_call.1} parent=65 // loop_footer_branch
                  %518 = sbr.rel target = $region68
                $region73: #{tpu_custom_call.1} parent=65 // loop_exit
                  _
                %s538 = sshrl.u32 %s452, 1
                %s539 = sand.u32 %s452, 1
                %s540 = smul.u32 %s538, 2
                %s541 = smul.u32 8, %s540
                %s542 = scalar_lea.vmem %s443, %s541 [#allocation5]
                %s543 = smul.u32 8, %s540
                %s544 = scalar_lea.vmem %s459, %s543
                // While loop
                $region74: #{tpu_custom_call.1} parent=65 // loop_pre_header
                  _
                $region75: #{tpu_custom_call.1} parent=65 // loop_header
                  %s546 = sphi 0, %s548
                  %p547 = scmp.ge.s32.totalorder %s546, %s539
                  %s551 = sphi 0, %s558
                  %s552 = sphi %s542, %s561
                  %s553 = sphi %s544, %s562
                $region76: #{tpu_custom_call.1} parent=65 // loop_header_branch
                  %550 = sbr.rel (%p547) target = $region80
                $region77: #{tpu_custom_call.1} parent=65 // loop_body
                  %v554 = vld [vmem:[%s552] sm:$0xff]
                  %555 = vst [vmem:[%s553] sm:$0xff] %v554
                  %s556 = sadd.s32 1, %s551
                  %p557 = scmp.ge.s32.totalorder %s556, %s539
                  %s558 = scalar_select %p557, 0, %s556
                  %s559 = smul.u32 %s558, 8
                  %s560 = smul.u32 %s558, 8
                  %s561 = scalar_lea.vmem %s542, %s559 [#allocation5]
                  %s562 = scalar_lea.vmem %s544, %s560
                $region78: #{tpu_custom_call.1} parent=65 // loop_footer
                  %s548 = sadd.s32 %s546, 1
                $region79: #{tpu_custom_call.1} parent=65 // loop_footer_branch
                  %545 = sbr.rel target = $region75
                $region80: #{tpu_custom_call.1} parent=65 // loop_exit
                  _
              $region66: #{tpu_custom_call.1} parent=43 // pred_fallthru
                _
              // Predicated region
              $region81: #{tpu_custom_call.1} parent=43 // pred_check
                _
              $region82: #{tpu_custom_call.1} parent=43 // pred_check_branch
                %564 = sbr.rel target = $region84
              $region83: #{tpu_custom_call.1} parent=43 // pred_region
                _
              $region84: #{tpu_custom_call.1} parent=43 // pred_fallthru
                _
            $region44: #{tpu_custom_call.1} parent=39 // pred_fallthru
              _
            // Predicated region
            $region45: #{tpu_custom_call.1} parent=39 // pred_check
              _
            $region46: #{tpu_custom_call.1} parent=39 // pred_check_branch
              %466 = sbr.rel target = $region48
            $region47: #{tpu_custom_call.1} parent=39 // pred_region
              %s468 = ssub.s32 256, 1
              %s469 = sshrl.u32 %s452, 1
              // While loop
              $region49: #{tpu_custom_call.1} parent=47 // loop_pre_header
                _
              $region50: #{tpu_custom_call.1} parent=47 // loop_header
                %s471 = sphi 0, %s473
                %p472 = scmp.ge.s32.totalorder %s471, %s469
                %s476 = sphi 0, %s485
                %s477 = sphi %s443, %s488
                %s478 = sphi %s459, %s489
              $region51: #{tpu_custom_call.1} parent=47 // loop_header_branch
                %475 = sbr.rel (%p472) target = $region55
              $region52: #{tpu_custom_call.1} parent=47 // loop_body
                %v479 = vld [vmem:[%s477] sm:%s468]
                %480 = vst [vmem:[%s478] sm:%s468] %v479
                %v481 = vld [vmem:[%s477 + $0x8] sm:%s468]
                %482 = vst [vmem:[%s478 + $0x8] sm:%s468] %v481
                %s483 = sadd.s32 1, %s476
                %p484 = scmp.ge.s32.totalorder %s483, %s469
                %s485 = scalar_select %p484, 0, %s483
                %s486 = smul.u32 %s485, 16
                %s487 = smul.u32 %s485, 16
                %s488 = scalar_lea.vmem %s443, %s486 [#allocation5]
                %s489 = scalar_lea.vmem %s459, %s487
              $region53: #{tpu_custom_call.1} parent=47 // loop_footer
                %s473 = sadd.s32 %s471, 1
              $region54: #{tpu_custom_call.1} parent=47 // loop_footer_branch
                %470 = sbr.rel target = $region50
              $region55: #{tpu_custom_call.1} parent=47 // loop_exit
                _
              %s490 = sshrl.u32 %s452, 1
              %s491 = sand.u32 %s452, 1
              %s492 = smul.u32 %s490, 2
              %s493 = smul.u32 8, %s492
              %s494 = scalar_lea.vmem %s443, %s493 [#allocation5]
              %s495 = smul.u32 8, %s492
              %s496 = scalar_lea.vmem %s459, %s495
              // While loop
              $region56: #{tpu_custom_call.1} parent=47 // loop_pre_header
                _
              $region57: #{tpu_custom_call.1} parent=47 // loop_header
                %s498 = sphi 0, %s500
                %p499 = scmp.ge.s32.totalorder %s498, %s491
                %s503 = sphi 0, %s510
                %s504 = sphi %s494, %s513
                %s505 = sphi %s496, %s514
              $region58: #{tpu_custom_call.1} parent=47 // loop_header_branch
                %502 = sbr.rel (%p499) target = $region62
              $region59: #{tpu_custom_call.1} parent=47 // loop_body
                %v506 = vld [vmem:[%s504] sm:%s468]
                %507 = vst [vmem:[%s505] sm:%s468] %v506
                %s508 = sadd.s32 1, %s503
                %p509 = scmp.ge.s32.totalorder %s508, %s491
                %s510 = scalar_select %p509, 0, %s508
                %s511 = smul.u32 %s510, 8
                %s512 = smul.u32 %s510, 8
                %s513 = scalar_lea.vmem %s494, %s511 [#allocation5]
                %s514 = scalar_lea.vmem %s496, %s512
              $region60: #{tpu_custom_call.1} parent=47 // loop_footer
                %s500 = sadd.s32 %s498, 1
              $region61: #{tpu_custom_call.1} parent=47 // loop_footer_branch
                %497 = sbr.rel target = $region57
              $region62: #{tpu_custom_call.1} parent=47 // loop_exit
                _
            $region48: #{tpu_custom_call.1} parent=39 // pred_fallthru
              _
          $region40: #{tpu_custom_call.1} parent=35 // pred_fallthru
            _
          %565 = vnop
        $region36: #{tpu_custom_call.1} parent=31 // pred_fallthru
          _
      $region32: #{tpu_custom_call.1} parent=5 // pred_fallthru
        _
      %p566 = scmp.le.s32.totalorder 2, %s21
      // Predicated region
      $region85: #{tpu_custom_call.1} parent=5 // pred_check
        %p567 = pneg %p566
      $region86: #{tpu_custom_call.1} parent=5 // pred_check_branch
        %569 = sbr.rel (%p567) target = $region88
      $region87: #{tpu_custom_call.1} parent=5 // pred_region
        %s570 = ssub.s32 %s21, 2
        // Predicated region
        $region89: #{tpu_custom_call.1} parent=87 // pred_check
          %p571 = pneg %p170
        $region90: #{tpu_custom_call.1} parent=87 // pred_check_branch
          %573 = sbr.rel (%p571) target = $region92
        $region91: #{tpu_custom_call.1} parent=87 // pred_region
          %s574 = sand.u32 %s155, 1
          %s575 = sand.u32 %s155, 1
          %s576 = smul.addr %s575, 16
          %s577 = scalar_lea.vmem [#allocation5], %s576
        $region92: #{tpu_custom_call.1} parent=87 // pred_fallthru
          _
      $region88: #{tpu_custom_call.1} parent=5 // pred_fallthru
        _
    $region6: #{tpu_custom_call.1} parent=1 // loop_footer
      %s25 = sadd.s32 1, %s21
    $region7: #{tpu_custom_call.1} parent=1 // loop_footer_branch
      %20 = sbr.rel target = $region3
    $region8: #{tpu_custom_call.1} parent=1 // loop_exit
      _

</llo_original>
